<compile_context>
chip_gen: v5e
topology: v5e:2x2
jax: 0.10.0
libtpu: 0.0.40
codegen_flags: <defaults>
</compile_context>

<pallas_src>
import functools

import jax
import jax.numpy as jnp
from jax import lax
from jax.experimental import pallas as pl
from jax.experimental.pallas import tpu as pltpu

_EPS = 1e-5  # nn.BatchNorm2d default eps


def _resblock_kernel(dil, K, Wpp, H, W, N, C, L1w, Pout, inv_cnt,
                     x_ref, w1_ref, w2_ref, v_ref, out_ref):
    """Single-step whole-array kernel.

    x_ref   : (N*C, Pxw) f32   padded input, one (image, channel) per sublane row
    w1_ref  : (N*C, K*K*N*C) bf16   block-diagonal im2col weight, conv1
    w2_ref  : (N*C, K*K*N*C) bf16   block-diagonal im2col weight, conv2
    v_ref   : (N*C, 6 + N*C) f32    [b1 g1 be1 b2 g2 be2 | channel-share matrix]
    out_ref : (N*C, Pout) f32       result slab; wrapper reshapes to NCHW
    """
    NC = N * C
    KK = K * K
    offs = [(ky * Wpp + kx) * dil for ky in range(K) for kx in range(K)]

    x = x_ref[...]
    vec = v_ref[...]

    b1, g1, be1 = vec[:, 0:1], vec[:, 1:2], vec[:, 2:3]
    b2, g2, be2 = vec[:, 3:4], vec[:, 4:5], vec[:, 5:6]
    share = vec[:, 6:6 + NC]          # (NC, NC): 1 where two rows carry the same channel

    def interior_mask(width, r0, r1, q0, q1):
        # Row/col decomposition of the flat lane index without integer div/mod on the VPU:
        # f32 iota; the +0.5 makes the floor-divide by Wpp exact despite f32 rounding.
        lane = lax.broadcasted_iota(jnp.int32, (1, width), 1).astype(jnp.float32)
        r = jnp.floor((lane + 0.5) * (1.0 / Wpp))
        q = lane - r * Wpp
        ok = (r >= r0) & (r < r1) & (q >= q0) & (q < q1)
        return jnp.where(ok, 1.0, 0.0)

    def conv(src, wmat, width):
        # im2col: 9 statically shifted windows stacked along sublanes, then a single
        # bf16 MXU matmul with f32 accumulation.
        col = jnp.concatenate([src[:, o:o + width] for o in offs], axis=0)   # (KK*NC, width)
        return lax.dot_general(
            wmat, col.astype(jnp.bfloat16),
            dimension_numbers=(((1,), (0,)), ((), ())),
            preferred_element_type=jnp.float32)                               # (NC, width) f32

    def batchnorm(z, mask, g, be):
        # PyTorch training-mode BN: biased batch stats over the N*H*W valid positions,
        # one fused masked pass (sum + sum of squares).  Per-image partial sums are combined
        # per channel with a tiny exact matmul (HIGHEST kept here on purpose: it is an
        # (NC, NC) x (NC, 2) dot, negligible cost, and keeps the stats in full f32).
        zm = z * mask
        s1 = jnp.sum(zm, axis=1, keepdims=True)          # (NC, 1)
        s2 = jnp.sum(zm * zm, axis=1, keepdims=True)     # (NC, 1)
        st = jnp.concatenate([s1, s2], axis=1)           # (NC, 2)
        tot = lax.dot_general(share, st,
                              dimension_numbers=(((1,), (0,)), ((), ())),
                              preferred_element_type=jnp.float32,
                              precision=lax.Precision.HIGHEST)                # (NC, 2)
        mean = tot[:, 0:1] * inv_cnt
        var = tot[:, 1:2] * inv_cnt - mean * mean        # single-pass; fine at these magnitudes
        return (z - mean) * (g * lax.rsqrt(var + _EPS)) + be

    # conv1 over the extended padded window -> BN1 -> ReLU; the mask multiply makes h1
    # exactly the dil-zero-padded conv1 activation in the same flat layout, so conv2 can
    # read it through the same static window slices.
    mask1 = interior_mask(L1w, dil, dil + H, dil, dil + W)
    z1 = conv(x, w1_ref[...], L1w) + b1
    h1 = jnp.maximum(batchnorm(z1, mask1, g1, be1), 0.0) * mask1              # (NC, L1w)

    mask2 = interior_mask(Pout, 0, H, 0, W)
    z2 = conv(h1, w2_ref[...], Pout) + b2
    y2 = batchnorm(z2, mask2, g2, be2)

    ident_off = 2 * dil * (Wpp + 1)
    identity = x[:, ident_off:ident_off + Pout]
    # Single full-width lane-dense store (no zero fill, no masked partial tail rewrite).
    out_ref[...] = jnp.maximum(y2 + identity, 0.0)


def res_block_dilated(x_nchw, params, *, size, dil):
    """Forward pass of ResBlockDilated. x_nchw: (N, C, H, W) float32."""
    N, C, H, W = x_nchw.shape
    K = size
    if K != 3:
        raise ValueError("ResBlockDilated residual add requires size == 3 (padding == dilation).")

    PP = 2 * dil                          # input padding (conv1 pad + the extended window)
    Hpp, Wpp = H + 2 * PP, W + 2 * PP
    off_max = 2 * dil * (Wpp + 1)         # largest static tap offset
    Pout = H * Wpp                        # output slab width (covers every valid output lane)
    L1w = Pout + off_max                  # conv1 / h1 working width (covers conv2's reads)
    need = L1w + off_max                  # input lanes conv1 may read
    extra = max(0, need - Hpp * Wpp)
    extra_rows = -(-extra // Wpp)         # pad a few extra bottom rows so all slices stay in-bounds
    Hx = Hpp + extra_rows

    x = x_nchw.astype(jnp.float32)
    xpad = jnp.pad(x, ((0, 0), (0, 0), (PP, PP + extra_rows), (PP, PP)))
    xflat = xpad.reshape(N * C, Hx * Wpp)                 # pad + free reshape, no transpose

    # Block-diagonal im2col weights: per tap, kron(I_N, w[:, :, ky, kx]) -> (N*C, N*C);
    # taps concatenated along the contraction axis; cast once to bf16 for the MXU.
    eye_n = jnp.eye(N, dtype=jnp.float32)

    def pack_w(w):
        w = w.astype(jnp.float32)
        taps = [jnp.kron(eye_n, w[:, :, ky, kx]) for ky in range(K) for kx in range(K)]
        return jnp.concatenate(taps, axis=1).astype(jnp.bfloat16)     # (N*C, K*K*N*C)

    w1p = pack_w(params["w1"])
    w2p = pack_w(params["w2"])

    vec6 = jnp.stack([params["b1"], params["g1"], params["be1"],
                      params["b2"], params["g2"], params["be2"]], axis=1).astype(jnp.float32)
    vec6 = jnp.tile(vec6, (N, 1))                                     # (N*C, 6), row n*C+c -> ch c
    share = jnp.kron(jnp.ones((N, N), jnp.float32), jnp.eye(C, dtype=jnp.float32))
    vecs = jnp.concatenate([vec6, share], axis=1)                     # (N*C, 6 + N*C)

    vspec = pl.BlockSpec(memory_space=pltpu.MemorySpace.VMEM)
    kernel = functools.partial(_resblock_kernel, dil, K, Wpp, H, W, N, C, L1w, Pout,
                               1.0 / float(N * H * W))

    out = pl.pallas_call(
        kernel,
        out_shape=jax.ShapeDtypeStruct((N * C, Pout), jnp.float32),
        in_specs=[vspec, vspec, vspec, vspec],
        out_specs=vspec,
    )(xflat, w1p, w2p, vecs)

    # (N*C, H*Wpp) -> NCHW: free reshape + one slice (no transpose needed in this layout).
    return out.reshape(N, C, H, Wpp)[:, :, :, :W]


def _reference(x_nchw, params, *, size, dil):
    """Pure-JAX reference mirroring the PyTorch module (training-mode BN).

    Conv operands are quantized to bf16 (then accumulated exactly in f32), matching the
    kernel's single-pass bf16 MXU numerics, so a tight tolerance still applies.
    """
    x = jnp.transpose(x_nchw, (0, 2, 3, 1)).astype(jnp.float32)

    def q(a):
        return a.astype(jnp.bfloat16).astype(jnp.float32)

    def conv(inp, w, b):
        w_hwio = jnp.transpose(w.astype(jnp.float32), (2, 3, 1, 0))
        y = lax.conv_general_dilated(
            q(inp), q(w_hwio), window_strides=(1, 1),
            padding=[(dil, dil), (dil, dil)],
            rhs_dilation=(dil, dil),
            dimension_numbers=("NHWC", "HWIO", "NHWC"),
            precision=lax.Precision.HIGHEST)
        return y + b.reshape(1, 1, 1, -1)

    def bn(z, g, be):
        mean = jnp.mean(z, axis=(0, 1, 2), keepdims=True)
        var = jnp.mean((z - mean) ** 2, axis=(0, 1, 2), keepdims=True)
        return (z - mean) / jnp.sqrt(var + _EPS) * g.reshape(1, 1, 1, -1) + be.reshape(1, 1, 1, -1)

    h = jnp.maximum(bn(conv(x, params["w1"], params["b1"]), params["g1"], params["be1"]), 0.0)
    h2 = bn(conv(h, params["w2"], params["b2"]), params["g2"], params["be2"])
    out = jnp.maximum(h2 + x, 0.0)
    return jnp.transpose(out, (0, 3, 1, 2))


if __name__ == "__main__":
    # Small shapes consistent with the module: hidden=4 channels, size=3, dil=2.
    N, HIDDEN, H, W = 2, 4, 16, 16
    SIZE, DIL = 3, 2

    key = jax.random.PRNGKey(0)
    ks = jax.random.split(key, 9)
    x = jax.random.normal(ks[0], (N, HIDDEN, H, W), jnp.float32)

    params = {
        "w1": 0.2 * jax.random.normal(ks[1], (HIDDEN, HIDDEN, SIZE, SIZE), jnp.float32),
        "b1": 0.1 * jax.random.normal(ks[2], (HIDDEN,), jnp.float32),
        "g1": 1.0 + 0.1 * jax.random.normal(ks[3], (HIDDEN,), jnp.float32),
        "be1": 0.1 * jax.random.normal(ks[4], (HIDDEN,), jnp.float32),
        "w2": 0.2 * jax.random.normal(ks[5], (HIDDEN, HIDDEN, SIZE, SIZE), jnp.float32),
        "b2": 0.1 * jax.random.normal(ks[6], (HIDDEN,), jnp.float32),
        "g2": 1.0 + 0.1 * jax.random.normal(ks[7], (HIDDEN,), jnp.float32),
        "be2": 0.1 * jax.random.normal(ks[8], (HIDDEN,), jnp.float32),
    }

    out = res_block_dilated(x, params, size=SIZE, dil=DIL)
    out = jax.block_until_ready(out)

    ref = jax.block_until_ready(_reference(x, params, size=SIZE, dil=DIL))
    assert out.shape == (N, HIDDEN, H, W)
    assert jnp.allclose(out, ref, atol=5e-3, rtol=5e-3), "Pallas kernel mismatch vs reference"

    print("KERNEL_OK")
</pallas_src>

<mosaic_0001>
module attributes {stable_mosaic.version = 11 : i64} {
  func.func @_resblock_kernel(%arg0: memref<8x600xf32, #tpu.memory_space<vmem>>, %arg1: memref<8x72xbf16, #tpu.memory_space<vmem>>, %arg2: memref<8x72xbf16, #tpu.memory_space<vmem>>, %arg3: memref<8x14xf32, #tpu.memory_space<vmem>>, %arg4: memref<8x384xf32, #tpu.memory_space<vmem>>) attributes {dimension_semantics = [], scalar_prefetch = 0 : i64, scratch_operands = 0 : i64, tpu.core_type = #tpu.core_type<tc>} {
    %c0 = arith.constant 0 : index
    %c0_0 = arith.constant 0 : index
    %0 = vector.load %arg0[%c0, %c0_0] : memref<8x600xf32, #tpu.memory_space<vmem>>, vector<8x600xf32>
    %c0_1 = arith.constant 0 : index
    %c0_2 = arith.constant 0 : index
    %1 = vector.load %arg3[%c0_1, %c0_2] : memref<8x14xf32, #tpu.memory_space<vmem>>, vector<8x14xf32>
    %2 = vector.extract_strided_slice %1 {offsets = [0, 0], sizes = [8, 1], strides = [1, 1]} : vector<8x14xf32> to vector<8x1xf32>
    %3 = vector.extract_strided_slice %1 {offsets = [0, 1], sizes = [8, 1], strides = [1, 1]} : vector<8x14xf32> to vector<8x1xf32>
    %4 = vector.extract_strided_slice %1 {offsets = [0, 2], sizes = [8, 1], strides = [1, 1]} : vector<8x14xf32> to vector<8x1xf32>
    %5 = vector.extract_strided_slice %1 {offsets = [0, 3], sizes = [8, 1], strides = [1, 1]} : vector<8x14xf32> to vector<8x1xf32>
    %6 = vector.extract_strided_slice %1 {offsets = [0, 4], sizes = [8, 1], strides = [1, 1]} : vector<8x14xf32> to vector<8x1xf32>
    %7 = vector.extract_strided_slice %1 {offsets = [0, 5], sizes = [8, 1], strides = [1, 1]} : vector<8x14xf32> to vector<8x1xf32>
    %8 = vector.extract_strided_slice %1 {offsets = [0, 6], sizes = [8, 8], strides = [1, 1]} : vector<8x14xf32> to vector<8x8xf32>
    %9 = tpu.iota {dimensions = array<i32: 1>} : vector<1x484xi32>
    %10 = arith.sitofp %9 : vector<1x484xi32> to vector<1x484xf32>
    %cst = arith.constant 5.000000e-01 : f32
    %11 = vector.broadcast %cst : f32 to vector<1x484xf32>
    %12 = arith.addf %10, %11 : vector<1x484xf32>
    %cst_3 = arith.constant 0.0416666679 : f32
    %13 = vector.broadcast %cst_3 : f32 to vector<1x484xf32>
    %14 = arith.mulf %12, %13 : vector<1x484xf32>
    %15 = math.floor %14 : vector<1x484xf32>
    %cst_4 = arith.constant 2.400000e+01 : f32
    %16 = vector.broadcast %cst_4 : f32 to vector<1x484xf32>
    %17 = arith.mulf %15, %16 : vector<1x484xf32>
    %18 = arith.subf %10, %17 : vector<1x484xf32>
    %cst_5 = arith.constant 2.000000e+00 : f32
    %19 = vector.broadcast %cst_5 : f32 to vector<1x484xf32>
    %20 = arith.cmpf oge, %15, %19 : vector<1x484xf32>
    %cst_6 = arith.constant 1.800000e+01 : f32
    %21 = vector.broadcast %cst_6 : f32 to vector<1x484xf32>
    %22 = arith.cmpf olt, %15, %21 : vector<1x484xf32>
    %23 = arith.andi %20, %22 : vector<1x484xi1>
    %cst_7 = arith.constant 2.000000e+00 : f32
    %24 = vector.broadcast %cst_7 : f32 to vector<1x484xf32>
    %25 = arith.cmpf oge, %18, %24 : vector<1x484xf32>
    %26 = arith.andi %23, %25 : vector<1x484xi1>
    %cst_8 = arith.constant 1.800000e+01 : f32
    %27 = vector.broadcast %cst_8 : f32 to vector<1x484xf32>
    %28 = arith.cmpf olt, %18, %27 : vector<1x484xf32>
    %29 = arith.andi %26, %28 : vector<1x484xi1>
    %cst_9 = arith.constant 1.000000e+00 : f32
    %cst_10 = arith.constant 0.000000e+00 : f32
    %30 = vector.broadcast %cst_9 : f32 to vector<1x484xf32>
    %31 = vector.broadcast %cst_10 : f32 to vector<1x484xf32>
    %32 = arith.select %29, %30, %31 : vector<1x484xi1>, vector<1x484xf32>
    %c0_11 = arith.constant 0 : index
    %c0_12 = arith.constant 0 : index
    %33 = vector.load %arg1[%c0_11, %c0_12] : memref<8x72xbf16, #tpu.memory_space<vmem>>, vector<8x72xbf16>
    %34 = vector.extract_strided_slice %0 {offsets = [0, 0], sizes = [8, 484], strides = [1, 1]} : vector<8x600xf32> to vector<8x484xf32>
    %35 = vector.extract_strided_slice %0 {offsets = [0, 2], sizes = [8, 484], strides = [1, 1]} : vector<8x600xf32> to vector<8x484xf32>
    %36 = vector.extract_strided_slice %0 {offsets = [0, 4], sizes = [8, 484], strides = [1, 1]} : vector<8x600xf32> to vector<8x484xf32>
    %37 = vector.extract_strided_slice %0 {offsets = [0, 48], sizes = [8, 484], strides = [1, 1]} : vector<8x600xf32> to vector<8x484xf32>
    %38 = vector.extract_strided_slice %0 {offsets = [0, 50], sizes = [8, 484], strides = [1, 1]} : vector<8x600xf32> to vector<8x484xf32>
    %39 = vector.extract_strided_slice %0 {offsets = [0, 52], sizes = [8, 484], strides = [1, 1]} : vector<8x600xf32> to vector<8x484xf32>
    %40 = vector.extract_strided_slice %0 {offsets = [0, 96], sizes = [8, 484], strides = [1, 1]} : vector<8x600xf32> to vector<8x484xf32>
    %41 = vector.extract_strided_slice %0 {offsets = [0, 98], sizes = [8, 484], strides = [1, 1]} : vector<8x600xf32> to vector<8x484xf32>
    %42 = vector.extract_strided_slice %0 {offsets = [0, 100], sizes = [8, 484], strides = [1, 1]} : vector<8x600xf32> to vector<8x484xf32>
    %43 = tpu.concatenate %34, %35, %36, %37, %38, %39, %40, %41, %42 in 0 : vector<8x484xf32>, vector<8x484xf32>, vector<8x484xf32>, vector<8x484xf32>, vector<8x484xf32>, vector<8x484xf32>, vector<8x484xf32>, vector<8x484xf32>, vector<8x484xf32> -> vector<72x484xf32>
    %44 = arith.truncf %43 : vector<72x484xf32> to vector<72x484xbf16>
    %cst_13 = arith.constant dense<0.000000e+00> : vector<8x484xf32>
    %45 = tpu.matmul %33, %44, %cst_13 {dimension_numbers = #tpu.dot_dimension_numbers<[1], [0], [0], [1], [0, 0, 1, 1], [], []>} : vector<8x72xbf16>, vector<72x484xbf16>, vector<8x484xf32> -> vector<8x484xf32>
    %46 = vector.broadcast %2 : vector<8x1xf32> to vector<8x484xf32>
    %47 = arith.addf %45, %46 : vector<8x484xf32>
    %48 = vector.broadcast %32 : vector<1x484xf32> to vector<8x484xf32>
    %49 = arith.mulf %47, %48 : vector<8x484xf32>
    %cst_14 = arith.constant dense<0.000000e+00> : vector<8xf32>
    %50 = vector.multi_reduction <add>, %49, %cst_14 [1] : vector<8x484xf32> to vector<8xf32>
    %51 = vector.shape_cast %50 : vector<8xf32> to vector<8x1xf32>
    %52 = arith.mulf %49, %49 : vector<8x484xf32>
    %cst_15 = arith.constant dense<0.000000e+00> : vector<8xf32>
    %53 = vector.multi_reduction <add>, %52, %cst_15 [1] : vector<8x484xf32> to vector<8xf32>
    %54 = vector.shape_cast %53 : vector<8xf32> to vector<8x1xf32>
    %55 = tpu.concatenate %51, %54 in 1 : vector<8x1xf32>, vector<8x1xf32> -> vector<8x2xf32>
    %cst_16 = arith.constant dense<0.000000e+00> : vector<8x2xf32>
    %56 = tpu.matmul %8, %55, %cst_16 {dimension_numbers = #tpu.dot_dimension_numbers<[1], [0], [0], [1], [0, 0, 1, 1], [], []>, precision = #tpu.contract_precision<fp32>} : vector<8x8xf32>, vector<8x2xf32>, vector<8x2xf32> -> vector<8x2xf32>
    %57 = vector.extract_strided_slice %56 {offsets = [0, 0], sizes = [8, 1], strides = [1, 1]} : vector<8x2xf32> to vector<8x1xf32>
    %cst_17 = arith.constant 0.001953125 : f32
    %58 = vector.broadcast %cst_17 : f32 to vector<8x1xf32>
    %59 = arith.mulf %57, %58 : vector<8x1xf32>
    %60 = vector.extract_strided_slice %56 {offsets = [0, 1], sizes = [8, 1], strides = [1, 1]} : vector<8x2xf32> to vector<8x1xf32>
    %cst_18 = arith.constant 0.001953125 : f32
    %61 = vector.broadcast %cst_18 : f32 to vector<8x1xf32>
    %62 = arith.mulf %60, %61 : vector<8x1xf32>
    %63 = arith.mulf %59, %59 : vector<8x1xf32>
    %64 = arith.subf %62, %63 : vector<8x1xf32>
    %65 = vector.broadcast %59 : vector<8x1xf32> to vector<8x484xf32>
    %66 = arith.subf %47, %65 : vector<8x484xf32>
    %cst_19 = arith.constant 9.99999974E-6 : f32
    %67 = vector.broadcast %cst_19 : f32 to vector<8x1xf32>
    %68 = arith.addf %64, %67 : vector<8x1xf32>
    %69 = math.rsqrt %68 : vector<8x1xf32>
    %70 = arith.mulf %3, %69 : vector<8x1xf32>
    %71 = vector.broadcast %70 : vector<8x1xf32> to vector<8x484xf32>
    %72 = arith.mulf %66, %71 : vector<8x484xf32>
    %73 = vector.broadcast %4 : vector<8x1xf32> to vector<8x484xf32>
    %74 = arith.addf %72, %73 : vector<8x484xf32>
    %cst_20 = arith.constant 0.000000e+00 : f32
    %75 = vector.broadcast %cst_20 : f32 to vector<8x484xf32>
    %76 = arith.maximumf %74, %75 : vector<8x484xf32>
    %77 = vector.broadcast %32 : vector<1x484xf32> to vector<8x484xf32>
    %78 = arith.mulf %76, %77 : vector<8x484xf32>
    %79 = tpu.iota {dimensions = array<i32: 1>} : vector<1x384xi32>
    %80 = arith.sitofp %79 : vector<1x384xi32> to vector<1x384xf32>
    %cst_21 = arith.constant 5.000000e-01 : f32
    %81 = vector.broadcast %cst_21 : f32 to vector<1x384xf32>
    %82 = arith.addf %80, %81 : vector<1x384xf32>
    %cst_22 = arith.constant 0.0416666679 : f32
    %83 = vector.broadcast %cst_22 : f32 to vector<1x384xf32>
    %84 = arith.mulf %82, %83 : vector<1x384xf32>
    %85 = math.floor %84 : vector<1x384xf32>
    %cst_23 = arith.constant 2.400000e+01 : f32
    %86 = vector.broadcast %cst_23 : f32 to vector<1x384xf32>
    %87 = arith.mulf %85, %86 : vector<1x384xf32>
    %88 = arith.subf %80, %87 : vector<1x384xf32>
    %cst_24 = arith.constant 0.000000e+00 : f32
    %89 = vector.broadcast %cst_24 : f32 to vector<1x384xf32>
    %90 = arith.cmpf oge, %85, %89 : vector<1x384xf32>
    %cst_25 = arith.constant 1.600000e+01 : f32
    %91 = vector.broadcast %cst_25 : f32 to vector<1x384xf32>
    %92 = arith.cmpf olt, %85, %91 : vector<1x384xf32>
    %93 = arith.andi %90, %92 : vector<1x384xi1>
    %cst_26 = arith.constant 0.000000e+00 : f32
    %94 = vector.broadcast %cst_26 : f32 to vector<1x384xf32>
    %95 = arith.cmpf oge, %88, %94 : vector<1x384xf32>
    %96 = arith.andi %93, %95 : vector<1x384xi1>
    %cst_27 = arith.constant 1.600000e+01 : f32
    %97 = vector.broadcast %cst_27 : f32 to vector<1x384xf32>
    %98 = arith.cmpf olt, %88, %97 : vector<1x384xf32>
    %99 = arith.andi %96, %98 : vector<1x384xi1>
    %cst_28 = arith.constant 1.000000e+00 : f32
    %cst_29 = arith.constant 0.000000e+00 : f32
    %100 = vector.broadcast %cst_28 : f32 to vector<1x384xf32>
    %101 = vector.broadcast %cst_29 : f32 to vector<1x384xf32>
    %102 = arith.select %99, %100, %101 : vector<1x384xi1>, vector<1x384xf32>
    %c0_30 = arith.constant 0 : index
    %c0_31 = arith.constant 0 : index
    %103 = vector.load %arg2[%c0_30, %c0_31] : memref<8x72xbf16, #tpu.memory_space<vmem>>, vector<8x72xbf16>
    %104 = vector.extract_strided_slice %78 {offsets = [0, 0], sizes = [8, 384], strides = [1, 1]} : vector<8x484xf32> to vector<8x384xf32>
    %105 = vector.extract_strided_slice %78 {offsets = [0, 2], sizes = [8, 384], strides = [1, 1]} : vector<8x484xf32> to vector<8x384xf32>
    %106 = vector.extract_strided_slice %78 {offsets = [0, 4], sizes = [8, 384], strides = [1, 1]} : vector<8x484xf32> to vector<8x384xf32>
    %107 = vector.extract_strided_slice %78 {offsets = [0, 48], sizes = [8, 384], strides = [1, 1]} : vector<8x484xf32> to vector<8x384xf32>
    %108 = vector.extract_strided_slice %78 {offsets = [0, 50], sizes = [8, 384], strides = [1, 1]} : vector<8x484xf32> to vector<8x384xf32>
    %109 = vector.extract_strided_slice %78 {offsets = [0, 52], sizes = [8, 384], strides = [1, 1]} : vector<8x484xf32> to vector<8x384xf32>
    %110 = vector.extract_strided_slice %78 {offsets = [0, 96], sizes = [8, 384], strides = [1, 1]} : vector<8x484xf32> to vector<8x384xf32>
    %111 = vector.extract_strided_slice %78 {offsets = [0, 98], sizes = [8, 384], strides = [1, 1]} : vector<8x484xf32> to vector<8x384xf32>
    %112 = vector.extract_strided_slice %78 {offsets = [0, 100], sizes = [8, 384], strides = [1, 1]} : vector<8x484xf32> to vector<8x384xf32>
    %113 = tpu.concatenate %104, %105, %106, %107, %108, %109, %110, %111, %112 in 0 : vector<8x384xf32>, vector<8x384xf32>, vector<8x384xf32>, vector<8x384xf32>, vector<8x384xf32>, vector<8x384xf32>, vector<8x384xf32>, vector<8x384xf32>, vector<8x384xf32> -> vector<72x384xf32>
    %114 = arith.truncf %113 : vector<72x384xf32> to vector<72x384xbf16>
    %cst_32 = arith.constant dense<0.000000e+00> : vector<8x384xf32>
    %115 = tpu.matmul %103, %114, %cst_32 {dimension_numbers = #tpu.dot_dimension_numbers<[1], [0], [0], [1], [0, 0, 1, 1], [], []>} : vector<8x72xbf16>, vector<72x384xbf16>, vector<8x384xf32> -> vector<8x384xf32>
    %116 = vector.broadcast %5 : vector<8x1xf32> to vector<8x384xf32>
    %117 = arith.addf %115, %116 : vector<8x384xf32>
    %118 = vector.broadcast %102 : vector<1x384xf32> to vector<8x384xf32>
    %119 = arith.mulf %117, %118 : vector<8x384xf32>
    %cst_33 = arith.constant dense<0.000000e+00> : vector<8xf32>
    %120 = vector.multi_reduction <add>, %119, %cst_33 [1] : vector<8x384xf32> to vector<8xf32>
    %121 = vector.shape_cast %120 : vector<8xf32> to vector<8x1xf32>
    %122 = arith.mulf %119, %119 : vector<8x384xf32>
    %cst_34 = arith.constant dense<0.000000e+00> : vector<8xf32>
    %123 = vector.multi_reduction <add>, %122, %cst_34 [1] : vector<8x384xf32> to vector<8xf32>
    %124 = vector.shape_cast %123 : vector<8xf32> to vector<8x1xf32>
    %125 = tpu.concatenate %121, %124 in 1 : vector<8x1xf32>, vector<8x1xf32> -> vector<8x2xf32>
    %cst_35 = arith.constant dense<0.000000e+00> : vector<8x2xf32>
    %126 = tpu.matmul %8, %125, %cst_35 {dimension_numbers = #tpu.dot_dimension_numbers<[1], [0], [0], [1], [0, 0, 1, 1], [], []>, precision = #tpu.contract_precision<fp32>} : vector<8x8xf32>, vector<8x2xf32>, vector<8x2xf32> -> vector<8x2xf32>
    %127 = vector.extract_strided_slice %126 {offsets = [0, 0], sizes = [8, 1], strides = [1, 1]} : vector<8x2xf32> to vector<8x1xf32>
    %cst_36 = arith.constant 0.001953125 : f32
    %128 = vector.broadcast %cst_36 : f32 to vector<8x1xf32>
    %129 = arith.mulf %127, %128 : vector<8x1xf32>
    %130 = vector.extract_strided_slice %126 {offsets = [0, 1], sizes = [8, 1], strides = [1, 1]} : vector<8x2xf32> to vector<8x1xf32>
    %cst_37 = arith.constant 0.001953125 : f32
    %131 = vector.broadcast %cst_37 : f32 to vector<8x1xf32>
    %132 = arith.mulf %130, %131 : vector<8x1xf32>
    %133 = arith.mulf %129, %129 : vector<8x1xf32>
    %134 = arith.subf %132, %133 : vector<8x1xf32>
    %135 = vector.broadcast %129 : vector<8x1xf32> to vector<8x384xf32>
    %136 = arith.subf %117, %135 : vector<8x384xf32>
    %cst_38 = arith.constant 9.99999974E-6 : f32
    %137 = vector.broadcast %cst_38 : f32 to vector<8x1xf32>
    %138 = arith.addf %134, %137 : vector<8x1xf32>
    %139 = math.rsqrt %138 : vector<8x1xf32>
    %140 = arith.mulf %6, %139 : vector<8x1xf32>
    %141 = vector.broadcast %140 : vector<8x1xf32> to vector<8x384xf32>
    %142 = arith.mulf %136, %141 : vector<8x384xf32>
    %143 = vector.broadcast %7 : vector<8x1xf32> to vector<8x384xf32>
    %144 = arith.addf %142, %143 : vector<8x384xf32>
    %145 = vector.extract_strided_slice %0 {offsets = [0, 100], sizes = [8, 384], strides = [1, 1]} : vector<8x600xf32> to vector<8x384xf32>
    %146 = arith.addf %144, %145 : vector<8x384xf32>
    %cst_39 = arith.constant 0.000000e+00 : f32
    %147 = vector.broadcast %cst_39 : f32 to vector<8x384xf32>
    %148 = arith.maximumf %146, %147 : vector<8x384xf32>
    %c0_40 = arith.constant 0 : index
    %c0_41 = arith.constant 0 : index
    %149 = vector.load %arg4[%c0_40, %c0_41] : memref<8x384xf32, #tpu.memory_space<vmem>>, vector<8x384xf32>
    tpu.vector_store %arg4[%c0_40, %c0_41], %148 {strides = array<i32>} : memref<8x384xf32, #tpu.memory_space<vmem>>, vector<8x384xf32>,
    return
  }
}

</mosaic_0001>

<llo_original>
// kernel: tpu_custom_call.1
$region0: #{tpu_custom_call.1}
  #allocation0 [shape = 'u32[]', space=smem, size = 0x4, offset = 0x4, fixed_abs, tag = 'smem constant byte address 0x4 - core index']
  #allocation1 [shape = 'u32[72,128]{1,0:T(1,128)}', space=vmem, size = 0x9000, scoped, tag = 'internal scratch']
  %s0 = inlined_call_operand.hbm [shape: f32[8,600], index: 0, kind: input, shape index: {}]
  %s1 = inlined_call_operand.hbm [shape: bf16[8,72], index: 1, kind: input, shape index: {}]
  %s2 = inlined_call_operand.hbm [shape: bf16[8,72], index: 2, kind: input, shape index: {}]
  %s3 = inlined_call_operand.hbm [shape: f32[8,14], index: 3, kind: input, shape index: {}]
  %s4 = inlined_call_operand.hbm [shape: f32[8,384], index: 4, kind: output, shape index: {}]
  %s5 = sld [smem:[#allocation0]]
  $region42: #{tpu_custom_call.1} parent=0
    _
  %s7 = ssub.s32 1, %s5
  %s8 = scalar_select 0, %s7, %s5
  $region1: #{tpu_custom_call.1} parent=0
    #allocation2 [shape = 'u8[20480]{0}', space=vmem, size = 0x5000, scoped, tag = 'input window, operand 0, single buffered']
    #allocation3 [shape = 's32[1]{0}', space=sflag, size = 0x4, scoped, tag = 'scoped memory for tpu_custom_call.1']
    #allocation4 [shape = 's32[1]{0}', space=sflag, size = 0x4, scoped, tag = 'scoped memory for tpu_custom_call.1']
    #allocation5 [shape = 'u8[2048]{0}', space=vmem, size = 0x800, scoped, tag = 'input window, operand 1, single buffered']
    #allocation6 [shape = 's32[1]{0}', space=sflag, size = 0x4, scoped, tag = 'scoped memory for tpu_custom_call.1']
    #allocation7 [shape = 'u8[2048]{0}', space=vmem, size = 0x800, scoped, tag = 'input window, operand 2, single buffered']
    #allocation8 [shape = 'u8[4096]{0}', space=vmem, size = 0x1000, scoped, tag = 'input window, operand 3, single buffered']
    #allocation9 [shape = 's32[1]{0}', space=sflag, size = 0x4, scoped, tag = 'scoped memory for tpu_custom_call.1']
    #allocation10 [shape = 'u8[12288]{0}', space=vmem, size = 0x3000, scoped, tag = 'output window, operand 0, single buffered']
    %9 = vsyncpa [#allocation3], 0
    %10 = vsyncpa [#allocation6], 0
    %11 = vsyncpa [#allocation9], 0
    %12 = vsyncpa [#allocation4], 0
    // Predicated region
    $region2: #{tpu_custom_call.1} parent=1 // pred_check
      _
    $region3: #{tpu_custom_call.1} parent=1 // pred_check_branch
      %14 = sbr.rel (0) target = $region5
    $region4: #{tpu_custom_call.1} parent=1 // pred_region
      %16 = vsyncadd [#allocation3], 0
      %s18 = sshll.u32 %s0, 4
      %s19 = int_to_ptr.hbm [resolvable:$true] %s18
      %s20 = sshll.u32 [#allocation2], 4
      %s21 = int_to_ptr.vmem [resolvable:$true] %s20
      %23 = dma.hbm_to_vmem [thread:$0]  %s19, 640, %s21, [#allocation3]
    $region5: #{tpu_custom_call.1} parent=1 // pred_fallthru
      _
    // Predicated region
    $region6: #{tpu_custom_call.1} parent=1 // pred_check
      _
    $region7: #{tpu_custom_call.1} parent=1 // pred_check_branch
      %25 = sbr.rel (0) target = $region9
    $region8: #{tpu_custom_call.1} parent=1 // pred_region
      %27 = vsyncadd [#allocation6], 0
      %s29 = sshll.u32 %s1, 4
      %s30 = int_to_ptr.hbm [resolvable:$true] %s29
      %s31 = sshll.u32 [#allocation5], 4
      %s32 = int_to_ptr.vmem [resolvable:$true] %s31
      %34 = dma.hbm_to_vmem [thread:$0]  %s30, 64, %s32, [#allocation6]
    $region9: #{tpu_custom_call.1} parent=1 // pred_fallthru
      _
    // Predicated region
    $region10: #{tpu_custom_call.1} parent=1 // pred_check
      _
    $region11: #{tpu_custom_call.1} parent=1 // pred_check_branch
      %36 = sbr.rel (0) target = $region13
    $region12: #{tpu_custom_call.1} parent=1 // pred_region
      %38 = vsyncadd [#allocation6], 0
      %s40 = sshll.u32 %s2, 4
      %s41 = int_to_ptr.hbm [resolvable:$true] %s40
      %s42 = sshll.u32 [#allocation7], 4
      %s43 = int_to_ptr.vmem [resolvable:$true] %s42
      %45 = dma.hbm_to_vmem [thread:$0]  %s41, 64, %s43, [#allocation6]
    $region13: #{tpu_custom_call.1} parent=1 // pred_fallthru
      _
    // Predicated region
    $region14: #{tpu_custom_call.1} parent=1 // pred_check
      _
    $region15: #{tpu_custom_call.1} parent=1 // pred_check_branch
      %47 = sbr.rel (0) target = $region17
    $region16: #{tpu_custom_call.1} parent=1 // pred_region
      %49 = vsyncadd [#allocation9], 0
      %s51 = sshll.u32 %s3, 4
      %s52 = int_to_ptr.hbm [resolvable:$true] %s51
      %s53 = sshll.u32 [#allocation8], 4
      %s54 = int_to_ptr.vmem [resolvable:$true] %s53
      %56 = dma.hbm_to_vmem [thread:$0]  %s52, 128, %s54, [#allocation9]
    $region17: #{tpu_custom_call.1} parent=1 // pred_fallthru
      _
    // Predicated region
    $region18: #{tpu_custom_call.1} parent=1 // pred_check
      _
    $region19: #{tpu_custom_call.1} parent=1 // pred_check_branch
      %58 = sbr.rel (0) target = $region21
    $region20: #{tpu_custom_call.1} parent=1 // pred_region
      %60 = dma.done [#allocation3], 640
    $region21: #{tpu_custom_call.1} parent=1 // pred_fallthru
      _
    // Predicated region
    $region22: #{tpu_custom_call.1} parent=1 // pred_check
      _
    $region23: #{tpu_custom_call.1} parent=1 // pred_check_branch
      %62 = sbr.rel (0) target = $region25
    $region24: #{tpu_custom_call.1} parent=1 // pred_region
      %64 = dma.done [#allocation6], 64
    $region25: #{tpu_custom_call.1} parent=1 // pred_fallthru
      _
    // Predicated region
    $region26: #{tpu_custom_call.1} parent=1 // pred_check
      _
    $region27: #{tpu_custom_call.1} parent=1 // pred_check_branch
      %66 = sbr.rel (0) target = $region29
    $region28: #{tpu_custom_call.1} parent=1 // pred_region
      %68 = dma.done [#allocation6], 64
    $region29: #{tpu_custom_call.1} parent=1 // pred_fallthru
      _
    // Predicated region
    $region30: #{tpu_custom_call.1} parent=1 // pred_check
      _
    $region31: #{tpu_custom_call.1} parent=1 // pred_check_branch
      %70 = sbr.rel (0) target = $region33
    $region32: #{tpu_custom_call.1} parent=1 // pred_region
      %72 = dma.done [#allocation9], 128
    $region33: #{tpu_custom_call.1} parent=1 // pred_fallthru
      _
    %v74 = vld [vmem:[#allocation2] sm:$0xff]
    %v75 = vld [vmem:[#allocation2 + $0x8] sm:$0xff]
    %v76 = vld [vmem:[#allocation2 + $0x10] sm:$0xff]
    %v77 = vld [vmem:[#allocation2 + $0x18] sm:$0xff]
    %v78 = vld [vmem:[#allocation2 + $0x20] sm:$0xff]
    %v79 = vld [vmem:[#allocation8] sm:$0xff]
    %v80 = vlaneseq
    %v81 = vand.u32 %v80, 127
    %v82 = vadd.s32 %v81, 128
    %v83 = vadd.s32 %v81, 256
    %v84 = vadd.s32 %v81, 384
    %v85 = vcvt.s32.f32 %v81
    %v86 = vcvt.s32.f32 %v82
    %v87 = vcvt.s32.f32 %v83
    %v88 = vcvt.s32.f32 %v84
    %v89 = vadd.f32 %v85, 0.5
    %v90 = vadd.f32 %v86, 0.5
    %v91 = vadd.f32 %v87, 0.5
    %v92 = vadd.f32 %v88, 0.5
    %v93 = vmul.f32 %v89, 0.041666668
    %v94 = vmul.f32 %v90, 0.041666668
    %v95 = vmul.f32 %v91, 0.041666668
    %v96 = vmul.f32 %v92, 0.041666668
    %v97 = vfloor.f32 %v93
    %v98 = vfloor.f32 %v94
    %v99 = vfloor.f32 %v95
    %v100 = vfloor.f32 %v96
    %v101 = vmul.f32 %v97, 24.0
    %v102 = vmul.f32 %v98, 24.0
    %v103 = vmul.f32 %v99, 24.0
    %v104 = vmul.f32 %v100, 24.0
    %v105 = vsub.f32 %v85, %v101
    %v106 = vsub.f32 %v86, %v102
    %v107 = vsub.f32 %v87, %v103
    %v108 = vsub.f32 %v88, %v104
    %vm109 = vcmp.ge.f32.partialorder %v97, 2.0
    %vm110 = vcmp.ge.f32.partialorder %v98, 2.0
    %vm111 = vcmp.ge.f32.partialorder %v99, 2.0
    %vm112 = vcmp.ge.f32.partialorder %v100, 2.0
    %vm113 = vcmp.lt.f32.partialorder %v97, 18.0
    %vm114 = vcmp.lt.f32.partialorder %v98, 18.0
    %vm115 = vcmp.lt.f32.partialorder %v99, 18.0
    %vm116 = vcmp.lt.f32.partialorder %v100, 18.0
    %vm117 = vmand %vm109, %vm113
    %vm118 = vmand %vm110, %vm114
    %vm119 = vmand %vm111, %vm115
    %vm120 = vmand %vm112, %vm116
    %vm121 = vcmp.ge.f32.partialorder %v105, 2.0
    %vm122 = vcmp.ge.f32.partialorder %v106, 2.0
    %vm123 = vcmp.ge.f32.partialorder %v107, 2.0
    %vm124 = vcmp.ge.f32.partialorder %v108, 2.0
    %vm125 = vmand %vm117, %vm121
    %vm126 = vmand %vm118, %vm122
    %vm127 = vmand %vm119, %vm123
    %vm128 = vmand %vm120, %vm124
    %vm129 = vcmp.lt.f32.partialorder %v105, 18.0
    %vm130 = vcmp.lt.f32.partialorder %v106, 18.0
    %vm131 = vcmp.lt.f32.partialorder %v107, 18.0
    %vm132 = vcmp.lt.f32.partialorder %v108, 18.0
    %vm133 = vmand %vm125, %vm129
    %vm134 = vmand %vm126, %vm130
    %vm135 = vmand %vm127, %vm131
    %vm136 = vmand %vm128, %vm132
    %v137 = vsel %vm133, 1.0, 0.0
    %v138 = vsel %vm134, 1.0, 0.0
    %v139 = vsel %vm135, 1.0, 0.0
    %v140 = vsel %vm136, 1.0, 0.0
    %v141 = vld [vmem:[#allocation5] sm:$0xf]
    %146 = vrot.lane.b32.xlu0 %v74, 126
    %v147 = vpop.permute.xlu0 %146
    %148 = vrot.lane.b32.xlu0 %v75, 126
    %v149 = vpop.permute.xlu0 %148
    %150 = vrot.lane.b32.xlu0 %v76, 126
    %v151 = vpop.permute.xlu0 %150
    %152 = vrot.lane.b32.xlu0 %v77, 126
    %v153 = vpop.permute.xlu0 %152
    %vm154 = vcmask 1031168
    %v155 = vsel %vm154, %v147, %v149
    %v156 = vsel %vm154, %v149, %v151
    %v157 = vsel %vm154, %v151, %v153
    %162 = vrot.lane.b32.xlu0 %v74, 124
    %v163 = vpop.permute.xlu0 %162
    %164 = vrot.lane.b32.xlu0 %v75, 124
    %v165 = vpop.permute.xlu0 %164
    %166 = vrot.lane.b32.xlu0 %v76, 124
    %v167 = vpop.permute.xlu0 %166
    %168 = vrot.lane.b32.xlu0 %v77, 124
    %v169 = vpop.permute.xlu0 %168
    %vm170 = vcmask 1014784
    %v171 = vsel %vm170, %v163, %v165
    %v172 = vsel %vm170, %v165, %v167
    %v173 = vsel %vm170, %v167, %v169
    %179 = vrot.lane.b32.xlu0 %v74, 80
    %v180 = vpop.permute.xlu0 %179
    %181 = vrot.lane.b32.xlu0 %v75, 80
    %v182 = vpop.permute.xlu0 %181
    %183 = vrot.lane.b32.xlu0 %v76, 80
    %v184 = vpop.permute.xlu0 %183
    %185 = vrot.lane.b32.xlu0 %v77, 80
    %v186 = vpop.permute.xlu0 %185
    %187 = vrot.lane.b32.xlu0 %v78, 80
    %v188 = vpop.permute.xlu0 %187
    %vm189 = vcmask 654336
    %v190 = vsel %vm189, %v180, %v182
    %v191 = vsel %vm189, %v182, %v184
    %v192 = vsel %vm189, %v184, %v186
    %v193 = vsel %vm189, %v186, %v188
    %198 = vrot.lane.b32.xlu0 %v74, 78
    %v199 = vpop.permute.xlu0 %198
    %200 = vrot.lane.b32.xlu0 %v75, 78
    %v201 = vpop.permute.xlu0 %200
    %202 = vrot.lane.b32.xlu0 %v76, 78
    %v203 = vpop.permute.xlu0 %202
    %204 = vrot.lane.b32.xlu0 %v77, 78
    %v205 = vpop.permute.xlu0 %204
    %206 = vrot.lane.b32.xlu0 %v78, 78
    %v207 = vpop.permute.xlu0 %206
    %vm208 = vcmask 637952
    %v209 = vsel %vm208, %v199, %v201
    %v210 = vsel %vm208, %v201, %v203
    %v211 = vsel %vm208, %v203, %v205
    %v212 = vsel %vm208, %v205, %v207
    %217 = vrot.lane.b32.xlu0 %v74, 76
    %v218 = vpop.permute.xlu0 %217
    %219 = vrot.lane.b32.xlu0 %v75, 76
    %v220 = vpop.permute.xlu0 %219
    %221 = vrot.lane.b32.xlu0 %v76, 76
    %v222 = vpop.permute.xlu0 %221
    %223 = vrot.lane.b32.xlu0 %v77, 76
    %v224 = vpop.permute.xlu0 %223
    %225 = vrot.lane.b32.xlu0 %v78, 76
    %v226 = vpop.permute.xlu0 %225
    %vm227 = vcmask 621568
    %v228 = vsel %vm227, %v218, %v220
    %v229 = vsel %vm227, %v220, %v222
    %v230 = vsel %vm227, %v222, %v224
    %v231 = vsel %vm227, %v224, %v226
    %236 = vrot.lane.b32.xlu0 %v74, 32
    %v237 = vpop.permute.xlu0 %236
    %238 = vrot.lane.b32.xlu0 %v75, 32
    %v239 = vpop.permute.xlu0 %238
    %240 = vrot.lane.b32.xlu0 %v76, 32
    %v241 = vpop.permute.xlu0 %240
    %242 = vrot.lane.b32.xlu0 %v77, 32
    %v243 = vpop.permute.xlu0 %242
    %244 = vrot.lane.b32.xlu0 %v78, 32
    %v245 = vpop.permute.xlu0 %244
    %vm246 = vcmask 261120
    %v247 = vsel %vm246, %v237, %v239
    %v248 = vsel %vm246, %v239, %v241
    %v249 = vsel %vm246, %v241, %v243
    %v250 = vsel %vm246, %v243, %v245
    %255 = vrot.lane.b32.xlu0 %v74, 30
    %v256 = vpop.permute.xlu0 %255
    %257 = vrot.lane.b32.xlu0 %v75, 30
    %v258 = vpop.permute.xlu0 %257
    %259 = vrot.lane.b32.xlu0 %v76, 30
    %v260 = vpop.permute.xlu0 %259
    %261 = vrot.lane.b32.xlu0 %v77, 30
    %v262 = vpop.permute.xlu0 %261
    %263 = vrot.lane.b32.xlu0 %v78, 30
    %v264 = vpop.permute.xlu0 %263
    %vm265 = vcmask 244736
    %v266 = vsel %vm265, %v256, %v258
    %v267 = vsel %vm265, %v258, %v260
    %v268 = vsel %vm265, %v260, %v262
    %v269 = vsel %vm265, %v262, %v264
    %274 = vrot.lane.b32.xlu0 %v74, 28
    %v275 = vpop.permute.xlu0 %274
    %276 = vrot.lane.b32.xlu0 %v75, 28
    %v277 = vpop.permute.xlu0 %276
    %278 = vrot.lane.b32.xlu0 %v76, 28
    %v279 = vpop.permute.xlu0 %278
    %280 = vrot.lane.b32.xlu0 %v77, 28
    %v281 = vpop.permute.xlu0 %280
    %282 = vrot.lane.b32.xlu0 %v78, 28
    %v283 = vpop.permute.xlu0 %282
    %vm284 = vcmask 228352
    %v285 = vsel %vm284, %v275, %v277
    %v286 = vsel %vm284, %v277, %v279
    %v287 = vsel %vm284, %v279, %v281
    %v288 = vsel %vm284, %v281, %v283
    %v293 = vpack.c.bf16 %v155, %v74
    %v294 = vpack.c.bf16 %v156, %v75
    %v295 = vpack.c.bf16 %v157, %v76
    %v296 = vpack.c.bf16 %v153, %v77
    %v297 = vpack.c.bf16 %v190, %v171
    %v298 = vpack.c.bf16 %v191, %v172
    %v299 = vpack.c.bf16 %v192, %v173
    %v300 = vpack.c.bf16 %v193, %v169
    %v301 = vpack.c.bf16 %v228, %v209
    %v302 = vpack.c.bf16 %v229, %v210
    %v303 = vpack.c.bf16 %v230, %v211
    %v304 = vpack.c.bf16 %v231, %v212
    %v305 = vpack.c.bf16 %v266, %v247
    %v306 = vpack.c.bf16 %v267, %v248
    %v307 = vpack.c.bf16 %v268, %v249
    %v308 = vpack.c.bf16 %v269, %v250
    %v309 = vpack.c.bf16 %v285, %v285
    %v310 = vpack.c.bf16 %v286, %v286
    %v311 = vpack.c.bf16 %v287, %v287
    %v312 = vpack.c.bf16 %v288, %v288
    %314 = vset.pattern.permute.xlu0 0
    %315 = vperm.xlu0 %314, %v79
    %v316 = vpop.permute.xlu0 %315
    %vm318 = vcmask 588800
    %v320 = vsel %vm318, %v141, 0
    %vm322 = vcmask 1043456
    %v324 = vsel %vm322, %v309, 0
    %v327 = vsel %vm322, %v310, 0
    %v330 = vsel %vm322, %v311, 0
    %v333 = vsel %vm322, %v312, 0
    %335 = vmatpush.bf16.msra.mxu0 0
    %336 = vmatpush.bf16.msra.mxu0 0
    %337 = vmatpush.bf16.msra.mxu0 0
    %338 = vmatpush.bf16.msra.mxu0 %v324
    %339 = vmatpush.bf16.msra.mxu0 %v305
    %340 = vmatpush.bf16.msra.mxu0 %v301
    %341 = vmatpush.bf16.msra.mxu0 %v297
    %342 = vmatpush.bf16.msra.mxu0 %v293
    %343 = vmatmul.bf16.gmra.mxu0 %v320
    %v344 = vpop.f32.mrf.mxu0
    %v345 = vadd.f32 %v316, %v344
    %v346 = vpop.f32.mrf.mxu0
    %347 = vdwg.mxu0
    %348 = vmatpush.bf16.msra.mxu0 0
    %349 = vmatpush.bf16.msra.mxu0 0
    %350 = vmatpush.bf16.msra.mxu0 0
    %351 = vmatpush.bf16.msra.mxu0 %v327
    %352 = vmatpush.bf16.msra.mxu0 %v306
    %353 = vmatpush.bf16.msra.mxu0 %v302
    %354 = vmatpush.bf16.msra.mxu0 %v298
    %355 = vmatpush.bf16.msra.mxu0 %v294
    %356 = vmatmul.bf16.gmra.mxu0 %v320
    %v357 = vpop.f32.mrf.mxu0
    %v358 = vadd.f32 %v316, %v357
    %v359 = vpop.f32.mrf.mxu0
    %360 = vdwg.mxu0
    %361 = vmatpush.bf16.msra.mxu0 0
    %362 = vmatpush.bf16.msra.mxu0 0
    %363 = vmatpush.bf16.msra.mxu0 0
    %364 = vmatpush.bf16.msra.mxu0 %v330
    %365 = vmatpush.bf16.msra.mxu0 %v307
    %366 = vmatpush.bf16.msra.mxu0 %v303
    %367 = vmatpush.bf16.msra.mxu0 %v299
    %368 = vmatpush.bf16.msra.mxu0 %v295
    %369 = vmatmul.bf16.gmra.mxu0 %v320
    %v370 = vpop.f32.mrf.mxu0
    %v371 = vadd.f32 %v316, %v370
    %v372 = vpop.f32.mrf.mxu0
    %373 = vdwg.mxu0
    %374 = vmatpush.bf16.msra.mxu0 0
    %375 = vmatpush.bf16.msra.mxu0 0
    %376 = vmatpush.bf16.msra.mxu0 0
    %377 = vmatpush.bf16.msra.mxu0 %v333
    %378 = vmatpush.bf16.msra.mxu0 %v308
    %379 = vmatpush.bf16.msra.mxu0 %v304
    %380 = vmatpush.bf16.msra.mxu0 %v300
    %381 = vmatpush.bf16.msra.mxu0 %v296
    %382 = vmatmul.bf16.gmra.mxu0 %v320
    %v383 = vpop.f32.mrf.mxu0
    %v384 = vadd.f32 %v316, %v383
    %v385 = vpop.f32.mrf.mxu0
    %386 = vdwg.mxu0
    %v387 = vmul.f32 %v345, %v137
    %v388 = vmul.f32 %v358, %v138
    %v389 = vmul.f32 %v371, %v139
    %v390 = vmul.f32 %v384, %v140
    %v391 = vadd.f32 %v387, %v388
    %v392 = vadd.f32 %v391, %v389
    %vm393 = vcmask 818176
    %v394 = vsel %vm393, %v390, 0.0
    %v395 = vadd.f32 %v392, %v394
    %396 = vadd.xlane.f32.xlu0 %v395
    %v397 = vpop.xlane.xlu0 %396
    %v398 = vmul.f32 %v387, %v387
    %v399 = vmul.f32 %v388, %v388
    %v400 = vmul.f32 %v389, %v389
    %v401 = vmul.f32 %v390, %v390
    %v402 = vadd.f32 %v398, %v399
    %v403 = vadd.f32 %v402, %v400
    %v404 = vsel %vm393, %v401, 0.0
    %v405 = vadd.f32 %v403, %v404
    %406 = vadd.xlane.f32.xlu0 %v405
    %v407 = vpop.xlane.xlu0 %406
    %vm408 = vcmask 7168
    %v409 = vsel %vm408, %v397, %v407
    %410 = vrot.lane.b32.xlu0 %v79, 122
    %v411 = vpop.permute.xlu0 %410
    %vm412 = vcmask 64512
    %v413 = vsel %vm412, %v411, 0
    %415 = vmatpush.msra.mxu0 0.0
    %416 = vmatpush.msra.mxu0 0.0
    %417 = vmatpush.msra.mxu0 0.0
    %418 = vmatpush.msra.mxu0 0.0
    %419 = vmatpush.msra.mxu0 0.0
    %420 = vmatpush.msra.mxu0 0.0
    %421 = vmatpush.msra.mxu0 0.0
    %422 = vmatpush.msra.mxu0 0.0
    %423 = vmatpush.msra.mxu0 0.0
    %424 = vmatpush.msra.mxu0 0.0
    %425 = vmatpush.msra.mxu0 0.0
    %426 = vmatpush.msra.mxu0 0.0
    %427 = vmatpush.msra.mxu0 0.0
    %428 = vmatpush.msra.mxu0 0.0
    %429 = vmatpush.msra.mxu0 0.0
    %v430 = vand.u32 %v409, 4294901760
    %431 = vmatpush.msra.mxu0 %v430
    %v432 = vand.u32 %v413, 4294901760
    %v433 = vsub.f32 %v413, %v432
    %v434 = vand.u32 %v433, 4294901760
    %v435 = vsub.f32 %v433, %v434
    %v436 = vand.u32 %v435, 4294901760
    %437 = vmatmul.f32.gmra.mxu0 %v436
    %v438 = vpop.f32.mrf.mxu0
    %v439 = vadd.f32 0.0, %v438
    %440 = vdwg.mxu0
    %441 = vmatpush.msra.mxu0 0.0
    %442 = vmatpush.msra.mxu0 0.0
    %443 = vmatpush.msra.mxu0 0.0
    %444 = vmatpush.msra.mxu0 0.0
    %445 = vmatpush.msra.mxu0 0.0
    %446 = vmatpush.msra.mxu0 0.0
    %447 = vmatpush.msra.mxu0 0.0
    %448 = vmatpush.msra.mxu0 0.0
    %449 = vmatpush.msra.mxu0 0.0
    %450 = vmatpush.msra.mxu0 0.0
    %451 = vmatpush.msra.mxu0 0.0
    %452 = vmatpush.msra.mxu0 0.0
    %453 = vmatpush.msra.mxu0 0.0
    %454 = vmatpush.msra.mxu0 0.0
    %455 = vmatpush.msra.mxu0 0.0
    %v456 = vand.u32 %v409, 4294901760
    %v457 = vsub.f32 %v409, %v456
    %v458 = vand.u32 %v457, 4294901760
    %v459 = vsub.f32 %v457, %v458
    %v460 = vand.u32 %v459, 4294901760
    %461 = vmatpush.msra.mxu0 %v460
    %v462 = vand.u32 %v413, 4294901760
    %463 = vmatmul.f32.gmra.mxu0 %v462
    %v464 = vpop.f32.mrf.mxu0
    %v465 = vadd.f32 %v439, %v464
    %466 = vdwg.mxu0
    %467 = vmatpush.msra.mxu0 0.0
    %468 = vmatpush.msra.mxu0 0.0
    %469 = vmatpush.msra.mxu0 0.0
    %470 = vmatpush.msra.mxu0 0.0
    %471 = vmatpush.msra.mxu0 0.0
    %472 = vmatpush.msra.mxu0 0.0
    %473 = vmatpush.msra.mxu0 0.0
    %474 = vmatpush.msra.mxu0 0.0
    %475 = vmatpush.msra.mxu0 0.0
    %476 = vmatpush.msra.mxu0 0.0
    %477 = vmatpush.msra.mxu0 0.0
    %478 = vmatpush.msra.mxu0 0.0
    %479 = vmatpush.msra.mxu0 0.0
    %480 = vmatpush.msra.mxu0 0.0
    %481 = vmatpush.msra.mxu0 0.0
    %v482 = vand.u32 %v409, 4294901760
    %v483 = vsub.f32 %v409, %v482
    %484 = vmatpush.msra.mxu0 %v483
    %v485 = vand.u32 %v413, 4294901760
    %v486 = vsub.f32 %v413, %v485
    %487 = vmatmul.f32.gmra.mxu0 %v486
    %v488 = vpop.f32.mrf.mxu0
    %v489 = vadd.f32 %v465, %v488
    %490 = vdwg.mxu0
    %491 = vmatpush.msra.mxu0 0.0
    %492 = vmatpush.msra.mxu0 0.0
    %493 = vmatpush.msra.mxu0 0.0
    %494 = vmatpush.msra.mxu0 0.0
    %495 = vmatpush.msra.mxu0 0.0
    %496 = vmatpush.msra.mxu0 0.0
    %497 = vmatpush.msra.mxu0 0.0
    %498 = vmatpush.msra.mxu0 0.0
    %499 = vmatpush.msra.mxu0 0.0
    %500 = vmatpush.msra.mxu0 0.0
    %501 = vmatpush.msra.mxu0 0.0
    %502 = vmatpush.msra.mxu0 0.0
    %503 = vmatpush.msra.mxu0 0.0
    %504 = vmatpush.msra.mxu0 0.0
    %505 = vmatpush.msra.mxu0 0.0
    %v506 = vand.u32 %v409, 4294901760
    %507 = vmatpush.msra.mxu0 %v506
    %v508 = vand.u32 %v413, 4294901760
    %v509 = vsub.f32 %v413, %v508
    %v510 = vand.u32 %v509, 4294901760
    %511 = vmatmul.f32.gmra.mxu0 %v510
    %v512 = vpop.f32.mrf.mxu0
    %v513 = vadd.f32 %v489, %v512
    %514 = vdwg.mxu0
    %515 = vmatpush.msra.mxu0 0.0
    %516 = vmatpush.msra.mxu0 0.0
    %517 = vmatpush.msra.mxu0 0.0
    %518 = vmatpush.msra.mxu0 0.0
    %519 = vmatpush.msra.mxu0 0.0
    %520 = vmatpush.msra.mxu0 0.0
    %521 = vmatpush.msra.mxu0 0.0
    %522 = vmatpush.msra.mxu0 0.0
    %523 = vmatpush.msra.mxu0 0.0
    %524 = vmatpush.msra.mxu0 0.0
    %525 = vmatpush.msra.mxu0 0.0
    %526 = vmatpush.msra.mxu0 0.0
    %527 = vmatpush.msra.mxu0 0.0
    %528 = vmatpush.msra.mxu0 0.0
    %529 = vmatpush.msra.mxu0 0.0
    %v530 = vand.u32 %v409, 4294901760
    %v531 = vsub.f32 %v409, %v530
    %v532 = vand.u32 %v531, 4294901760
    %533 = vmatpush.msra.mxu0 %v532
    %v534 = vand.u32 %v413, 4294901760
    %535 = vmatmul.f32.gmra.mxu0 %v534
    %v536 = vpop.f32.mrf.mxu0
    %v537 = vadd.f32 %v513, %v536
    %538 = vdwg.mxu0
    %539 = vmatpush.msra.mxu0 0.0
    %540 = vmatpush.msra.mxu0 0.0
    %541 = vmatpush.msra.mxu0 0.0
    %542 = vmatpush.msra.mxu0 0.0
    %543 = vmatpush.msra.mxu0 0.0
    %544 = vmatpush.msra.mxu0 0.0
    %545 = vmatpush.msra.mxu0 0.0
    %546 = vmatpush.msra.mxu0 0.0
    %547 = vmatpush.msra.mxu0 0.0
    %548 = vmatpush.msra.mxu0 0.0
    %549 = vmatpush.msra.mxu0 0.0
    %550 = vmatpush.msra.mxu0 0.0
    %551 = vmatpush.msra.mxu0 0.0
    %552 = vmatpush.msra.mxu0 0.0
    %553 = vmatpush.msra.mxu0 0.0
    %v554 = vand.u32 %v409, 4294901760
    %555 = vmatpush.msra.mxu0 %v554
    %v556 = vand.u32 %v413, 4294901760
    %557 = vmatmul.f32.gmra.mxu0 %v556
    %v558 = vpop.f32.mrf.mxu0
    %v559 = vadd.f32 %v537, %v558
    %560 = vdwg.mxu0
    %v561 = vmul.f32 %v559, 0.001953125
    %v562 = vmul.f32 %v561, %v561
    %564 = vrot.lane.b32.xlu0 %v562, 1
    %v565 = vpop.permute.xlu0 %564
    %v567 = vsub.f32 %v561, %v565
    %569 = vset.pattern.permute.xlu0 0
    %570 = vperm.xlu0 %569, %v561
    %v571 = vpop.permute.xlu0 %570
    %v573 = vsub.f32 %v345, %v571
    %v574 = vsub.f32 %v358, %v571
    %v575 = vsub.f32 %v371, %v571
    %v576 = vsub.f32 %v384, %v571
    %v577 = vadd.f32 %v567, 1e-05
    %v578 = vrsqrt.pop %v577
    %v579 = vmul.f32 %v578, %v577
    %v580 = vmul.f32 %v579, %v578
    %v581 = vmul.f32 0.5, %v580
    %v582 = vsub.f32 1.5, %v581
    %v583 = vmul.f32 %v578, %v582
    %vm584 = vweird.f32 %v577
    %vm585 = vweird.f32 %v578
    %vm586 = vmor %vm584, %vm585
    %v587 = vsel %vm586, %v578, %v583
    %v588 = vmul.f32 %v79, %v587
    %590 = vset.pattern.permute.xlu0 1
    %591 = vperm.xlu0 %590, %v588
    %v592 = vpop.permute.xlu0 %591
    %v594 = vmul.f32 %v573, %v592
    %v595 = vmul.f32 %v574, %v592
    %v596 = vmul.f32 %v575, %v592
    %v597 = vmul.f32 %v576, %v592
    %598 = vset.pattern.permute.xlu0 2
    %599 = vperm.xlu0 %598, %v79
    %v600 = vpop.permute.xlu0 %599
    %v602 = vadd.f32 %v594, %v600
    %v603 = vadd.f32 %v595, %v600
    %v604 = vadd.f32 %v596, %v600
    %v605 = vadd.f32 %v597, %v600
    %v606 = vmax.f32 %v602, 0.0
    %v607 = vmax.f32 %v603, 0.0
    %v608 = vmax.f32 %v604, 0.0
    %v609 = vmax.f32 %v605, 0.0
    %v610 = vmul.f32 %v606, %v137
    %v611 = vmul.f32 %v607, %v138
    %v612 = vmul.f32 %v608, %v139
    %v613 = vmul.f32 %v609, %v140
    %vm614 = vcmp.ge.f32.partialorder %v97, 0.0
    %vm615 = vcmp.ge.f32.partialorder %v98, 0.0
    %vm616 = vcmp.ge.f32.partialorder %v99, 0.0
    %vm617 = vcmp.lt.f32.partialorder %v97, 16.0
    %vm618 = vcmp.lt.f32.partialorder %v98, 16.0
    %vm619 = vcmp.lt.f32.partialorder %v99, 16.0
    %vm620 = vmand %vm614, %vm617
    %vm621 = vmand %vm615, %vm618
    %vm622 = vmand %vm616, %vm619
    %vm623 = vcmp.ge.f32.partialorder %v105, 0.0
    %vm624 = vcmp.ge.f32.partialorder %v106, 0.0
    %vm625 = vcmp.ge.f32.partialorder %v107, 0.0
    %vm626 = vmand %vm620, %vm623
    %vm627 = vmand %vm621, %vm624
    %vm628 = vmand %vm622, %vm625
    %vm629 = vcmp.lt.f32.partialorder %v105, 16.0
    %vm630 = vcmp.lt.f32.partialorder %v106, 16.0
    %vm631 = vcmp.lt.f32.partialorder %v107, 16.0
    %vm632 = vmand %vm626, %vm629
    %vm633 = vmand %vm627, %vm630
    %vm634 = vmand %vm628, %vm631
    %v635 = vsel %vm632, 1.0, 0.0
    %v636 = vsel %vm633, 1.0, 0.0
    %v637 = vsel %vm634, 1.0, 0.0
    %v638 = vld [vmem:[#allocation7] sm:$0xf]
    %643 = vrot.lane.b32.xlu0 %v610, 126
    %v644 = vpop.permute.xlu0 %643
    %645 = vrot.lane.b32.xlu0 %v611, 126
    %v646 = vpop.permute.xlu0 %645
    %647 = vrot.lane.b32.xlu0 %v612, 126
    %v648 = vpop.permute.xlu0 %647
    %649 = vrot.lane.b32.xlu0 %v613, 126
    %v650 = vpop.permute.xlu0 %649
    %v651 = vsel %vm154, %v644, %v646
    %v652 = vsel %vm154, %v646, %v648
    %v653 = vsel %vm154, %v648, %v650
    %657 = vrot.lane.b32.xlu0 %v610, 124
    %v658 = vpop.permute.xlu0 %657
    %659 = vrot.lane.b32.xlu0 %v611, 124
    %v660 = vpop.permute.xlu0 %659
    %661 = vrot.lane.b32.xlu0 %v612, 124
    %v662 = vpop.permute.xlu0 %661
    %663 = vrot.lane.b32.xlu0 %v613, 124
    %v664 = vpop.permute.xlu0 %663
    %v665 = vsel %vm170, %v658, %v660
    %v666 = vsel %vm170, %v660, %v662
    %v667 = vsel %vm170, %v662, %v664
    %671 = vrot.lane.b32.xlu0 %v610, 80
    %v672 = vpop.permute.xlu0 %671
    %673 = vrot.lane.b32.xlu0 %v611, 80
    %v674 = vpop.permute.xlu0 %673
    %675 = vrot.lane.b32.xlu0 %v612, 80
    %v676 = vpop.permute.xlu0 %675
    %677 = vrot.lane.b32.xlu0 %v613, 80
    %v678 = vpop.permute.xlu0 %677
    %v679 = vsel %vm189, %v672, %v674
    %v680 = vsel %vm189, %v674, %v676
    %v681 = vsel %vm189, %v676, %v678
    %685 = vrot.lane.b32.xlu0 %v610, 78
    %v686 = vpop.permute.xlu0 %685
    %687 = vrot.lane.b32.xlu0 %v611, 78
    %v688 = vpop.permute.xlu0 %687
    %689 = vrot.lane.b32.xlu0 %v612, 78
    %v690 = vpop.permute.xlu0 %689
    %691 = vrot.lane.b32.xlu0 %v613, 78
    %v692 = vpop.permute.xlu0 %691
    %v693 = vsel %vm208, %v686, %v688
    %v694 = vsel %vm208, %v688, %v690
    %v695 = vsel %vm208, %v690, %v692
    %699 = vrot.lane.b32.xlu0 %v610, 76
    %v700 = vpop.permute.xlu0 %699
    %701 = vrot.lane.b32.xlu0 %v611, 76
    %v702 = vpop.permute.xlu0 %701
    %703 = vrot.lane.b32.xlu0 %v612, 76
    %v704 = vpop.permute.xlu0 %703
    %705 = vrot.lane.b32.xlu0 %v613, 76
    %v706 = vpop.permute.xlu0 %705
    %v707 = vsel %vm227, %v700, %v702
    %v708 = vsel %vm227, %v702, %v704
    %v709 = vsel %vm227, %v704, %v706
    %713 = vrot.lane.b32.xlu0 %v610, 32
    %v714 = vpop.permute.xlu0 %713
    %715 = vrot.lane.b32.xlu0 %v611, 32
    %v716 = vpop.permute.xlu0 %715
    %717 = vrot.lane.b32.xlu0 %v612, 32
    %v718 = vpop.permute.xlu0 %717
    %719 = vrot.lane.b32.xlu0 %v613, 32
    %v720 = vpop.permute.xlu0 %719
    %v721 = vsel %vm246, %v714, %v716
    %v722 = vsel %vm246, %v716, %v718
    %v723 = vsel %vm246, %v718, %v720
    %727 = vrot.lane.b32.xlu0 %v610, 30
    %v728 = vpop.permute.xlu0 %727
    %729 = vrot.lane.b32.xlu0 %v611, 30
    %v730 = vpop.permute.xlu0 %729
    %731 = vrot.lane.b32.xlu0 %v612, 30
    %v732 = vpop.permute.xlu0 %731
    %733 = vrot.lane.b32.xlu0 %v613, 30
    %v734 = vpop.permute.xlu0 %733
    %v735 = vsel %vm265, %v728, %v730
    %v736 = vsel %vm265, %v730, %v732
    %v737 = vsel %vm265, %v732, %v734
    %741 = vrot.lane.b32.xlu0 %v610, 28
    %v742 = vpop.permute.xlu0 %741
    %743 = vrot.lane.b32.xlu0 %v611, 28
    %v744 = vpop.permute.xlu0 %743
    %745 = vrot.lane.b32.xlu0 %v612, 28
    %v746 = vpop.permute.xlu0 %745
    %747 = vrot.lane.b32.xlu0 %v613, 28
    %v748 = vpop.permute.xlu0 %747
    %v749 = vsel %vm284, %v742, %v744
    %v750 = vsel %vm284, %v744, %v746
    %v751 = vsel %vm284, %v746, %v748
    %v755 = vpack.c.bf16 %v651, %v610
    %v756 = vpack.c.bf16 %v652, %v611
    %v757 = vpack.c.bf16 %v653, %v612
    %v758 = vpack.c.bf16 %v679, %v665
    %v759 = vpack.c.bf16 %v680, %v666
    %v760 = vpack.c.bf16 %v681, %v667
    %v761 = vpack.c.bf16 %v707, %v693
    %v762 = vpack.c.bf16 %v708, %v694
    %v763 = vpack.c.bf16 %v709, %v695
    %v764 = vpack.c.bf16 %v735, %v721
    %v765 = vpack.c.bf16 %v736, %v722
    %v766 = vpack.c.bf16 %v737, %v723
    %v767 = vpack.c.bf16 %v749, %v749
    %v768 = vpack.c.bf16 %v750, %v750
    %v769 = vpack.c.bf16 %v751, %v751
    %770 = vset.pattern.permute.xlu0 3
    %771 = vperm.xlu0 %770, %v79
    %v772 = vpop.permute.xlu0 %771
    %v775 = vsel %vm318, %v638, 0
    %v778 = vsel %vm322, %v767, 0
    %v781 = vsel %vm322, %v768, 0
    %v784 = vsel %vm322, %v769, 0
    %786 = vmatpush.bf16.msra.mxu0 0
    %787 = vmatpush.bf16.msra.mxu0 0
    %788 = vmatpush.bf16.msra.mxu0 0
    %789 = vmatpush.bf16.msra.mxu0 %v778
    %790 = vmatpush.bf16.msra.mxu0 %v764
    %791 = vmatpush.bf16.msra.mxu0 %v761
    %792 = vmatpush.bf16.msra.mxu0 %v758
    %793 = vmatpush.bf16.msra.mxu0 %v755
    %794 = vmatmul.bf16.gmra.mxu0 %v775
    %v795 = vpop.f32.mrf.mxu0
    %v796 = vadd.f32 %v772, %v795
    %v797 = vpop.f32.mrf.mxu0
    %798 = vdwg.mxu0
    %799 = vmatpush.bf16.msra.mxu0 0
    %800 = vmatpush.bf16.msra.mxu0 0
    %801 = vmatpush.bf16.msra.mxu0 0
    %802 = vmatpush.bf16.msra.mxu0 %v781
    %803 = vmatpush.bf16.msra.mxu0 %v765
    %804 = vmatpush.bf16.msra.mxu0 %v762
    %805 = vmatpush.bf16.msra.mxu0 %v759
    %806 = vmatpush.bf16.msra.mxu0 %v756
    %807 = vmatmul.bf16.gmra.mxu0 %v775
    %v808 = vpop.f32.mrf.mxu0
    %v809 = vadd.f32 %v772, %v808
    %v810 = vpop.f32.mrf.mxu0
    %811 = vdwg.mxu0
    %812 = vmatpush.bf16.msra.mxu0 0
    %813 = vmatpush.bf16.msra.mxu0 0
    %814 = vmatpush.bf16.msra.mxu0 0
    %815 = vmatpush.bf16.msra.mxu0 %v784
    %816 = vmatpush.bf16.msra.mxu0 %v766
    %817 = vmatpush.bf16.msra.mxu0 %v763
    %818 = vmatpush.bf16.msra.mxu0 %v760
    %819 = vmatpush.bf16.msra.mxu0 %v757
    %820 = vmatmul.bf16.gmra.mxu0 %v775
    %v821 = vpop.f32.mrf.mxu0
    %v822 = vadd.f32 %v772, %v821
    %v823 = vpop.f32.mrf.mxu0
    %824 = vdwg.mxu0
    %v825 = vmul.f32 %v796, %v635
    %v826 = vmul.f32 %v809, %v636
    %v827 = vmul.f32 %v822, %v637
    %v828 = vadd.f32 %v825, %v826
    %v829 = vadd.f32 %v828, %v827
    %830 = vadd.xlane.f32.xlu0 %v829
    %v831 = vpop.xlane.xlu0 %830
    %v832 = vmul.f32 %v825, %v825
    %v833 = vmul.f32 %v826, %v826
    %v834 = vmul.f32 %v827, %v827
    %v835 = vadd.f32 %v832, %v833
    %v836 = vadd.f32 %v835, %v834
    %837 = vadd.xlane.f32.xlu0 %v836
    %v838 = vpop.xlane.xlu0 %837
    %v839 = vsel %vm408, %v831, %v838
    %840 = vmatpush.msra.mxu0 0.0
    %841 = vmatpush.msra.mxu0 0.0
    %842 = vmatpush.msra.mxu0 0.0
    %843 = vmatpush.msra.mxu0 0.0
    %844 = vmatpush.msra.mxu0 0.0
    %845 = vmatpush.msra.mxu0 0.0
    %846 = vmatpush.msra.mxu0 0.0
    %847 = vmatpush.msra.mxu0 0.0
    %848 = vmatpush.msra.mxu0 0.0
    %849 = vmatpush.msra.mxu0 0.0
    %850 = vmatpush.msra.mxu0 0.0
    %851 = vmatpush.msra.mxu0 0.0
    %852 = vmatpush.msra.mxu0 0.0
    %853 = vmatpush.msra.mxu0 0.0
    %854 = vmatpush.msra.mxu0 0.0
    %v855 = vand.u32 %v839, 4294901760
    %856 = vmatpush.msra.mxu0 %v855
    %v857 = vand.u32 %v413, 4294901760
    %v858 = vsub.f32 %v413, %v857
    %v859 = vand.u32 %v858, 4294901760
    %v860 = vsub.f32 %v858, %v859
    %v861 = vand.u32 %v860, 4294901760
    %862 = vmatmul.f32.gmra.mxu0 %v861
    %v863 = vpop.f32.mrf.mxu0
    %v864 = vadd.f32 0.0, %v863
    %865 = vdwg.mxu0
    %866 = vmatpush.msra.mxu0 0.0
    %867 = vmatpush.msra.mxu0 0.0
    %868 = vmatpush.msra.mxu0 0.0
    %869 = vmatpush.msra.mxu0 0.0
    %870 = vmatpush.msra.mxu0 0.0
    %871 = vmatpush.msra.mxu0 0.0
    %872 = vmatpush.msra.mxu0 0.0
    %873 = vmatpush.msra.mxu0 0.0
    %874 = vmatpush.msra.mxu0 0.0
    %875 = vmatpush.msra.mxu0 0.0
    %876 = vmatpush.msra.mxu0 0.0
    %877 = vmatpush.msra.mxu0 0.0
    %878 = vmatpush.msra.mxu0 0.0
    %879 = vmatpush.msra.mxu0 0.0
    %880 = vmatpush.msra.mxu0 0.0
    %v881 = vand.u32 %v839, 4294901760
    %v882 = vsub.f32 %v839, %v881
    %v883 = vand.u32 %v882, 4294901760
    %v884 = vsub.f32 %v882, %v883
    %v885 = vand.u32 %v884, 4294901760
    %886 = vmatpush.msra.mxu0 %v885
    %v887 = vand.u32 %v413, 4294901760
    %888 = vmatmul.f32.gmra.mxu0 %v887
    %v889 = vpop.f32.mrf.mxu0
    %v890 = vadd.f32 %v864, %v889
    %891 = vdwg.mxu0
    %892 = vmatpush.msra.mxu0 0.0
    %893 = vmatpush.msra.mxu0 0.0
    %894 = vmatpush.msra.mxu0 0.0
    %895 = vmatpush.msra.mxu0 0.0
    %896 = vmatpush.msra.mxu0 0.0
    %897 = vmatpush.msra.mxu0 0.0
    %898 = vmatpush.msra.mxu0 0.0
    %899 = vmatpush.msra.mxu0 0.0
    %900 = vmatpush.msra.mxu0 0.0
    %901 = vmatpush.msra.mxu0 0.0
    %902 = vmatpush.msra.mxu0 0.0
    %903 = vmatpush.msra.mxu0 0.0
    %904 = vmatpush.msra.mxu0 0.0
    %905 = vmatpush.msra.mxu0 0.0
    %906 = vmatpush.msra.mxu0 0.0
    %v907 = vand.u32 %v839, 4294901760
    %v908 = vsub.f32 %v839, %v907
    %909 = vmatpush.msra.mxu0 %v908
    %v910 = vand.u32 %v413, 4294901760
    %v911 = vsub.f32 %v413, %v910
    %912 = vmatmul.f32.gmra.mxu0 %v911
    %v913 = vpop.f32.mrf.mxu0
    %v914 = vadd.f32 %v890, %v913
    %915 = vdwg.mxu0
    %916 = vmatpush.msra.mxu0 0.0
    %917 = vmatpush.msra.mxu0 0.0
    %918 = vmatpush.msra.mxu0 0.0
    %919 = vmatpush.msra.mxu0 0.0
    %920 = vmatpush.msra.mxu0 0.0
    %921 = vmatpush.msra.mxu0 0.0
    %922 = vmatpush.msra.mxu0 0.0
    %923 = vmatpush.msra.mxu0 0.0
    %924 = vmatpush.msra.mxu0 0.0
    %925 = vmatpush.msra.mxu0 0.0
    %926 = vmatpush.msra.mxu0 0.0
    %927 = vmatpush.msra.mxu0 0.0
    %928 = vmatpush.msra.mxu0 0.0
    %929 = vmatpush.msra.mxu0 0.0
    %930 = vmatpush.msra.mxu0 0.0
    %v931 = vand.u32 %v839, 4294901760
    %932 = vmatpush.msra.mxu0 %v931
    %v933 = vand.u32 %v413, 4294901760
    %v934 = vsub.f32 %v413, %v933
    %v935 = vand.u32 %v934, 4294901760
    %936 = vmatmul.f32.gmra.mxu0 %v935
    %v937 = vpop.f32.mrf.mxu0
    %v938 = vadd.f32 %v914, %v937
    %939 = vdwg.mxu0
    %940 = vmatpush.msra.mxu0 0.0
    %941 = vmatpush.msra.mxu0 0.0
    %942 = vmatpush.msra.mxu0 0.0
    %943 = vmatpush.msra.mxu0 0.0
    %944 = vmatpush.msra.mxu0 0.0
    %945 = vmatpush.msra.mxu0 0.0
    %946 = vmatpush.msra.mxu0 0.0
    %947 = vmatpush.msra.mxu0 0.0
    %948 = vmatpush.msra.mxu0 0.0
    %949 = vmatpush.msra.mxu0 0.0
    %950 = vmatpush.msra.mxu0 0.0
    %951 = vmatpush.msra.mxu0 0.0
    %952 = vmatpush.msra.mxu0 0.0
    %953 = vmatpush.msra.mxu0 0.0
    %954 = vmatpush.msra.mxu0 0.0
    %v955 = vand.u32 %v839, 4294901760
    %v956 = vsub.f32 %v839, %v955
    %v957 = vand.u32 %v956, 4294901760
    %958 = vmatpush.msra.mxu0 %v957
    %v959 = vand.u32 %v413, 4294901760
    %960 = vmatmul.f32.gmra.mxu0 %v959
    %v961 = vpop.f32.mrf.mxu0
    %v962 = vadd.f32 %v938, %v961
    %963 = vdwg.mxu0
    %964 = vmatpush.msra.mxu0 0.0
    %965 = vmatpush.msra.mxu0 0.0
    %966 = vmatpush.msra.mxu0 0.0
    %967 = vmatpush.msra.mxu0 0.0
    %968 = vmatpush.msra.mxu0 0.0
    %969 = vmatpush.msra.mxu0 0.0
    %970 = vmatpush.msra.mxu0 0.0
    %971 = vmatpush.msra.mxu0 0.0
    %972 = vmatpush.msra.mxu0 0.0
    %973 = vmatpush.msra.mxu0 0.0
    %974 = vmatpush.msra.mxu0 0.0
    %975 = vmatpush.msra.mxu0 0.0
    %976 = vmatpush.msra.mxu0 0.0
    %977 = vmatpush.msra.mxu0 0.0
    %978 = vmatpush.msra.mxu0 0.0
    %v979 = vand.u32 %v839, 4294901760
    %980 = vmatpush.msra.mxu0 %v979
    %v981 = vand.u32 %v413, 4294901760
    %982 = vmatmul.f32.gmra.mxu0 %v981
    %v983 = vpop.f32.mrf.mxu0
    %v984 = vadd.f32 %v962, %v983
    %985 = vdwg.mxu0
    %v986 = vmul.f32 %v984, 0.001953125
    %v987 = vmul.f32 %v986, %v986
    %989 = vrot.lane.b32.xlu0 %v987, 1
    %v990 = vpop.permute.xlu0 %989
    %v992 = vsub.f32 %v986, %v990
    %994 = vset.pattern.permute.xlu0 0
    %995 = vperm.xlu0 %994, %v986
    %v996 = vpop.permute.xlu0 %995
    %v998 = vsub.f32 %v796, %v996
    %v999 = vsub.f32 %v809, %v996
    %v1000 = vsub.f32 %v822, %v996
    %v1001 = vadd.f32 %v992, 1e-05
    %v1002 = vrsqrt.pop %v1001
    %v1003 = vmul.f32 %v1002, %v1001
    %v1004 = vmul.f32 %v1003, %v1002
    %v1005 = vmul.f32 0.5, %v1004
    %v1006 = vsub.f32 1.5, %v1005
    %v1007 = vmul.f32 %v1002, %v1006
    %vm1008 = vweird.f32 %v1001
    %vm1009 = vweird.f32 %v1002
    %vm1010 = vmor %vm1008, %vm1009
    %v1011 = vsel %vm1010, %v1002, %v1007
    %1013 = vrot.lane.b32.xlu0 %v1011, 3
    %v1014 = vpop.permute.xlu0 %1013
    %v1016 = vmul.f32 %v79, %v1014
    %1018 = vset.pattern.permute.xlu0 4
    %1019 = vperm.xlu0 %1018, %v1016
    %v1020 = vpop.permute.xlu0 %1019
    %v1022 = vmul.f32 %v998, %v1020
    %v1023 = vmul.f32 %v999, %v1020
    %v1024 = vmul.f32 %v1000, %v1020
    %1025 = vset.pattern.permute.xlu0 5
    %1026 = vperm.xlu0 %1025, %v79
    %v1027 = vpop.permute.xlu0 %1026
    %v1029 = vadd.f32 %v1022, %v1027
    %v1030 = vadd.f32 %v1023, %v1027
    %v1031 = vadd.f32 %v1024, %v1027
    %v1032 = vadd.f32 %v1029, %v285
    %v1033 = vadd.f32 %v1030, %v286
    %v1034 = vadd.f32 %v1031, %v287
    %v1035 = vmax.f32 %v1032, 0.0
    %v1036 = vmax.f32 %v1033, 0.0
    %v1037 = vmax.f32 %v1034, 0.0
    %1038 = vst [vmem:[#allocation10] sm:$0xff] %v1035
    %1039 = vst [vmem:[#allocation10 + $0x8] sm:$0xff] %v1036
    %1040 = vst [vmem:[#allocation10 + $0x10] sm:$0xff] %v1037
    // Predicated region
    $region34: #{tpu_custom_call.1} parent=1 // pred_check
      _
    $region35: #{tpu_custom_call.1} parent=1 // pred_check_branch
      %1042 = sbr.rel (0) target = $region37
    $region36: #{tpu_custom_call.1} parent=1 // pred_region
      %1044 = vsyncadd [#allocation4], 0
      %s1046 = sshll.u32 [#allocation10], 4
      %s1047 = int_to_ptr.vmem [resolvable:$true] %s1046
      %s1048 = sshll.u32 %s4, 4
      %s1049 = int_to_ptr.hbm [resolvable:$true] %s1048
      %1051 = dma.vmem_to_hbm [thread:$0]  %s1047, 384, %s1049, [#allocation4]
    $region37: #{tpu_custom_call.1} parent=1 // pred_fallthru
      _
    // Predicated region
    $region38: #{tpu_custom_call.1} parent=1 // pred_check
      _
    $region39: #{tpu_custom_call.1} parent=1 // pred_check_branch
      %1053 = sbr.rel (0) target = $region41
    $region40: #{tpu_custom_call.1} parent=1 // pred_region
      %1055 = dma.done [#allocation4], 384
    $region41: #{tpu_custom_call.1} parent=1 // pred_fallthru
      _
    %1056 = vsyncpa [#allocation3], 1
    %1057 = vsyncpa [#allocation6], 1
    %1058 = vsyncpa [#allocation9], 1
    %1059 = vsyncpa [#allocation4], 1

</llo_original>
